<compile_context>
chip_gen: v7x
topology: tpu7x:2x2x1
jax: 0.10.0
libtpu: 0.0.40
codegen_flags: <defaults>
</compile_context>

<pallas_src>
import jax
import jax.numpy as jnp
from jax.experimental import pallas as pl
from jax.experimental.pallas import tpu as pltpu


def _round_up(x, m):
    return (x + m - 1) // m * m


# -----------------------------------------------------------------------------
# Pallas kernel: two independent matmuls + L2-normalize (per batch tile)
# -----------------------------------------------------------------------------
def two_tower_kernel(
    q_cls_ref,      # [TB, D]    query CLS embedding (compute dtype, e.g. bf16)
    doc_cat_ref,    # [TB, 2D]   [name_cls | desc_cls] (compute dtype)
    wq_ref,         # [D, D]     query_proj weight (compute dtype, resident)
    bq_ref,         # [1, D]     query_proj bias (f32, resident)
    wdoc_ref,       # [2D, D]    folded doc weight [0.5*Wn@Wdoc ; 0.5*Wd@Wdoc]
    bdoc_ref,       # [1, D]     folded doc bias (f32, resident)
    q_out_ref,      # [TB, D]    normalized query embedding (f32)
    doc_out_ref,    # [TB, D]    normalized doc embedding (f32)
):
    f32 = jnp.float32

    # query_emb = query_proj(query_cls)  (bf16 x bf16 -> f32 accumulate on MXU)
    q = jnp.dot(q_cls_ref[...], wq_ref[...], preferred_element_type=f32) + bq_ref[...]

    # doc_emb = doc_proj(mean(name_proj(name), desc_proj(desc)))
    # folded into one K=2D matmul against the pre-combined weight.
    doc = jnp.dot(doc_cat_ref[...], wdoc_ref[...], preferred_element_type=f32) + bdoc_ref[...]

    # F.normalize(x, dim=1): x / max(||x||_2, eps), eps = 1e-12
    # implemented as x * rsqrt(max(sum(x^2), eps^2))  (EUP rsqrt, no divide)
    eps = 1e-12
    q_ss = jnp.maximum(jnp.sum(q * q, axis=-1, keepdims=True), eps * eps)
    d_ss = jnp.maximum(jnp.sum(doc * doc, axis=-1, keepdims=True), eps * eps)

    q_out_ref[...] = (q * jax.lax.rsqrt(q_ss)).astype(q_out_ref.dtype)
    doc_out_ref[...] = (doc * jax.lax.rsqrt(d_ss)).astype(doc_out_ref.dtype)


# -----------------------------------------------------------------------------
# Host-side weight fold (done once per checkpoint)
# -----------------------------------------------------------------------------
def fold_doc_params(params):
    """Fold the doc tower: mean of the two projections followed by doc_proj
    becomes a single [2D, D] weight + [1, D] bias."""
    wn, bn = params["wn"], params["bn"]
    wd, bd = params["wd"], params["bd"]
    wdoc, bdoc = params["wdoc"], params["bdoc"]
    wn_f = 0.5 * (wn @ wdoc)
    wd_f = 0.5 * (wd @ wdoc)
    b_doc = (0.5 * (bn + bd)) @ wdoc + bdoc           # [1, D]
    return dict(
        wq=params["wq"], bq=params["bq"],
        w_doc=jnp.concatenate([wn_f, wd_f], axis=0),  # [2D, D]
        b_doc=b_doc,
    )


# -----------------------------------------------------------------------------
# Wrapper: batch-tiled grid, resident weights, bf16 MXU operands
# -----------------------------------------------------------------------------
def two_tower_forward(q_cls, name_cls, desc_cls, folded, *,
                      block_b=256, compute_dtype=jnp.bfloat16):
    """Projection / mean / normalize hot path as one batch-tiled Pallas call.

    q_cls, name_cls, desc_cls: [B, D] f32 CLS embeddings.
    folded: output of fold_doc_params().
    Returns (query_emb, doc_emb), each [B, D] f32, L2-normalized along dim 1.
    """
    B, D = q_cls.shape

    # Doc-path operands concatenated so the doc tower is a single K=2D matmul.
    doc_cat = jnp.concatenate([name_cls, desc_cls], axis=1)      # [B, 2D]

    # Batch tile: multiple of 8 (f32 sublane); 256-aligned for big batches
    # (full v6e/v7x MXU passes).  TB=256 keeps the kernel well under the v7x
    # 32 MiB scoped-VMEM default even at D=768.
    tb = min(block_b, _round_up(B, 8))
    padded_b = _round_up(B, tb)
    if padded_b != B:
        pad = ((0, padded_b - B), (0, 0))
        q_cls = jnp.pad(q_cls, pad)
        doc_cat = jnp.pad(doc_cat, pad)

    # bf16 operands for the MXU; biases stay f32 (added post-accumulation).
    q_in = q_cls.astype(compute_dtype)
    doc_in = doc_cat.astype(compute_dtype)
    wq = folded["wq"].astype(compute_dtype)
    w_doc = folded["w_doc"].astype(compute_dtype)
    bq = folded["bq"].astype(jnp.float32)
    b_doc = folded["b_doc"].astype(jnp.float32)

    grid = (padded_b // tb,)

    q_out, doc_out = pl.pallas_call(
        two_tower_kernel,
        out_shape=(
            jax.ShapeDtypeStruct((padded_b, D), jnp.float32),
            jax.ShapeDtypeStruct((padded_b, D), jnp.float32),
        ),
        grid_spec=pltpu.PrefetchScalarGridSpec(
            num_scalar_prefetch=0,
            grid=grid,
            in_specs=[
                pl.BlockSpec((tb, D), lambda i: (i, 0)),       # q_cls tile
                pl.BlockSpec((tb, 2 * D), lambda i: (i, 0)),   # [name|desc] tile
                pl.BlockSpec((D, D), lambda i: (0, 0)),        # wq   (VMEM-resident)
                pl.BlockSpec((1, D), lambda i: (0, 0)),        # bq   (resident)
                pl.BlockSpec((2 * D, D), lambda i: (0, 0)),    # folded doc weight
                pl.BlockSpec((1, D), lambda i: (0, 0)),        # folded doc bias
            ],
            out_specs=(
                pl.BlockSpec((tb, D), lambda i: (i, 0)),
                pl.BlockSpec((tb, D), lambda i: (i, 0)),
            ),
        ),
        compiler_params=pltpu.CompilerParams(
            dimension_semantics=("parallel",),   # shard batch over v7x's 2 TCs
        ),
    )(q_in, doc_in, wq, bq, w_doc, b_doc)

    return q_out[:B], doc_out[:B]


# -----------------------------------------------------------------------------
# Glue: deterministic parameters + synthetic text encoder
# -----------------------------------------------------------------------------
def init_params(key, embedding_dim):
    """Deterministic init of the four Linear layers (weights stored as [in, out])."""
    ks = jax.random.split(key, 8)
    scale = 1.0 / jnp.sqrt(embedding_dim)

    def lin(kw, kb):
        w = jax.random.uniform(kw, (embedding_dim, embedding_dim),
                               jnp.float32, -scale, scale)
        b = jax.random.uniform(kb, (1, embedding_dim), jnp.float32, -scale, scale)
        return w, b

    wq, bq = lin(ks[0], ks[1])
    wn, bn = lin(ks[2], ks[3])
    wd, bd = lin(ks[4], ks[5])
    wdoc, bdoc = lin(ks[6], ks[7])
    return dict(wq=wq, bq=bq, wn=wn, bn=bn, wd=wd, bd=bd, wdoc=wdoc, bdoc=bdoc)


def encode_text(emb_table, input_ids, attention_mask):
    # TODO(synk): pretrained DistilBERT text encoder has no Pallas equivalent
    # without a checkpoint; use a deterministic embedding-table stand-in and
    # mimic `last_hidden_state[:, 0, :]` by taking the position-0 (CLS) token.
    del attention_mask  # CLS extraction does not use the mask
    return emb_table[input_ids[:, 0]]


def reference_forward(q_cls, name_cls, desc_cls, p):
    """Pure-JAX f32 reference of the original (un-folded) projection path."""
    q = q_cls @ p["wq"] + p["bq"]
    n = name_cls @ p["wn"] + p["bn"]
    d = desc_cls @ p["wd"] + p["bd"]
    doc = ((n + d) * 0.5) @ p["wdoc"] + p["bdoc"]
    q = q / jnp.maximum(jnp.linalg.norm(q, axis=1, keepdims=True), 1e-12)
    doc = doc / jnp.maximum(jnp.linalg.norm(doc, axis=1, keepdims=True), 1e-12)
    return q, doc


if __name__ == "__main__":
    B = 2            # batch
    SEQ = 8          # token sequence length
    D = 128          # embedding_dim (small, lane-aligned stand-in for 768)
    VOCAB = 64

    root = jax.random.PRNGKey(0)
    k_par, k_emb, k_qid, k_nid, k_did = jax.random.split(root, 5)

    params = init_params(k_par, D)
    folded = fold_doc_params(params)        # once per checkpoint
    emb_table = jax.random.normal(k_emb, (VOCAB, D), jnp.float32) * 0.02

    # Synthetic tokenized inputs (query_tokens, product_token_features).
    query_ids = jax.random.randint(k_qid, (B, SEQ), 0, VOCAB)
    name_ids = jax.random.randint(k_nid, (B, SEQ), 0, VOCAB)
    desc_ids = jax.random.randint(k_did, (B, SEQ), 0, VOCAB)
    attn_mask = jnp.ones((B, SEQ), jnp.int32)

    # "text_encoder" CLS embeddings (plain-JAX glue).
    q_cls = encode_text(emb_table, query_ids, attn_mask)
    name_cls = encode_text(emb_table, name_ids, attn_mask)
    desc_cls = encode_text(emb_table, desc_ids, attn_mask)

    # Pallas hot path.
    q_emb, doc_emb = two_tower_forward(q_cls, name_cls, desc_cls, folded)
    jax.block_until_ready((q_emb, doc_emb))

    # Correctness check against pure-JAX f32 reference (bf16 MXU operands ->
    # loosened tolerance; the math is equivalent).
    q_ref, doc_ref = reference_forward(q_cls, name_cls, desc_cls, params)
    assert q_emb.shape == (B, D) and doc_emb.shape == (B, D)
    assert jnp.allclose(q_emb, q_ref, atol=1e-2, rtol=1e-2)
    assert jnp.allclose(doc_emb, doc_ref, atol=1e-2, rtol=1e-2)

    print("KERNEL_OK")
</pallas_src>

<mosaic_0001>
module attributes {stable_mosaic.version = 11 : i64} {
  func.func @two_tower_kernel(%arg0: i32, %arg1: memref<8x128xbf16, #tpu.memory_space<vmem>>, %arg2: memref<8x256xbf16, #tpu.memory_space<vmem>>, %arg3: memref<128x128xbf16, #tpu.memory_space<vmem>>, %arg4: memref<1x128xf32, #tpu.memory_space<vmem>>, %arg5: memref<256x128xbf16, #tpu.memory_space<vmem>>, %arg6: memref<1x128xf32, #tpu.memory_space<vmem>>, %arg7: memref<8x128xf32, #tpu.memory_space<vmem>>, %arg8: memref<8x128xf32, #tpu.memory_space<vmem>>) attributes {dimension_semantics = [#tpu.dimension_semantics<parallel>], iteration_bounds = array<i64: 1>, scalar_prefetch = 0 : i64, scratch_operands = 0 : i64, tpu.core_type = #tpu.core_type<tc>, window_params = [{transform_indices = @transform_0, window_bounds = array<i64: 8, 128>}, {transform_indices = @transform_1, window_bounds = array<i64: 8, 256>}, {pipeline_mode = #tpu.pipeline_mode<synchronous>, transform_indices = @transform_2, window_bounds = array<i64: 128, 128>}, {pipeline_mode = #tpu.pipeline_mode<synchronous>, transform_indices = @transform_3, window_bounds = array<i64: 1, 128>}, {pipeline_mode = #tpu.pipeline_mode<synchronous>, transform_indices = @transform_4, window_bounds = array<i64: 256, 128>}, {pipeline_mode = #tpu.pipeline_mode<synchronous>, transform_indices = @transform_5, window_bounds = array<i64: 1, 128>}, {transform_indices = @transform_6, window_bounds = array<i64: 8, 128>}, {transform_indices = @transform_7, window_bounds = array<i64: 8, 128>}]} {
    %c0 = arith.constant 0 : index
    %c0_0 = arith.constant 0 : index
    %0 = vector.load %arg1[%c0, %c0_0] : memref<8x128xbf16, #tpu.memory_space<vmem>>, vector<8x128xbf16>
    %c0_1 = arith.constant 0 : index
    %c0_2 = arith.constant 0 : index
    %1 = vector.load %arg3[%c0_1, %c0_2] : memref<128x128xbf16, #tpu.memory_space<vmem>>, vector<128x128xbf16>
    %cst = arith.constant dense<0.000000e+00> : vector<8x128xf32>
    %2 = tpu.matmul %0, %1, %cst {dimension_numbers = #tpu.dot_dimension_numbers<[1], [0], [0], [1], [0, 0, 1, 1], [], []>} : vector<8x128xbf16>, vector<128x128xbf16>, vector<8x128xf32> -> vector<8x128xf32>
    %c0_3 = arith.constant 0 : index
    %c0_4 = arith.constant 0 : index
    %3 = vector.load %arg4[%c0_3, %c0_4] : memref<1x128xf32, #tpu.memory_space<vmem>>, vector<1x128xf32>
    %4 = vector.broadcast %3 : vector<1x128xf32> to vector<8x128xf32>
    %5 = arith.addf %2, %4 : vector<8x128xf32>
    %c0_5 = arith.constant 0 : index
    %c0_6 = arith.constant 0 : index
    %6 = vector.load %arg2[%c0_5, %c0_6] : memref<8x256xbf16, #tpu.memory_space<vmem>>, vector<8x256xbf16>
    %c0_7 = arith.constant 0 : index
    %c0_8 = arith.constant 0 : index
    %7 = vector.load %arg5[%c0_7, %c0_8] : memref<256x128xbf16, #tpu.memory_space<vmem>>, vector<256x128xbf16>
    %cst_9 = arith.constant dense<0.000000e+00> : vector<8x128xf32>
    %8 = tpu.matmul %6, %7, %cst_9 {dimension_numbers = #tpu.dot_dimension_numbers<[1], [0], [0], [1], [0, 0, 1, 1], [], []>} : vector<8x256xbf16>, vector<256x128xbf16>, vector<8x128xf32> -> vector<8x128xf32>
    %c0_10 = arith.constant 0 : index
    %c0_11 = arith.constant 0 : index
    %9 = vector.load %arg6[%c0_10, %c0_11] : memref<1x128xf32, #tpu.memory_space<vmem>>, vector<1x128xf32>
    %10 = vector.broadcast %9 : vector<1x128xf32> to vector<8x128xf32>
    %11 = arith.addf %8, %10 : vector<8x128xf32>
    %12 = arith.mulf %5, %5 : vector<8x128xf32>
    %cst_12 = arith.constant dense<0.000000e+00> : vector<8xf32>
    %13 = vector.multi_reduction <add>, %12, %cst_12 [1] : vector<8x128xf32> to vector<8xf32>
    %14 = vector.shape_cast %13 : vector<8xf32> to vector<8x1xf32>
    %cst_13 = arith.constant 1.000000e-24 : f32
    %15 = vector.broadcast %cst_13 : f32 to vector<8x1xf32>
    %16 = arith.maximumf %14, %15 : vector<8x1xf32>
    %17 = arith.mulf %11, %11 : vector<8x128xf32>
    %cst_14 = arith.constant dense<0.000000e+00> : vector<8xf32>
    %18 = vector.multi_reduction <add>, %17, %cst_14 [1] : vector<8x128xf32> to vector<8xf32>
    %19 = vector.shape_cast %18 : vector<8xf32> to vector<8x1xf32>
    %cst_15 = arith.constant 1.000000e-24 : f32
    %20 = vector.broadcast %cst_15 : f32 to vector<8x1xf32>
    %21 = arith.maximumf %19, %20 : vector<8x1xf32>
    %22 = math.rsqrt %16 : vector<8x1xf32>
    %23 = vector.broadcast %22 : vector<8x1xf32> to vector<8x128xf32>
    %24 = arith.mulf %5, %23 : vector<8x128xf32>
    %c0_16 = arith.constant 0 : index
    %c0_17 = arith.constant 0 : index
    %25 = vector.load %arg7[%c0_16, %c0_17] : memref<8x128xf32, #tpu.memory_space<vmem>>, vector<8x128xf32>
    tpu.vector_store %arg7[%c0_16, %c0_17], %24 {strides = array<i32>} : memref<8x128xf32, #tpu.memory_space<vmem>>, vector<8x128xf32>,
    %26 = math.rsqrt %21 : vector<8x1xf32>
    %27 = vector.broadcast %26 : vector<8x1xf32> to vector<8x128xf32>
    %28 = arith.mulf %11, %27 : vector<8x128xf32>
    %c0_18 = arith.constant 0 : index
    %c0_19 = arith.constant 0 : index
    %29 = vector.load %arg8[%c0_18, %c0_19] : memref<8x128xf32, #tpu.memory_space<vmem>>, vector<8x128xf32>
    tpu.vector_store %arg8[%c0_18, %c0_19], %28 {strides = array<i32>} : memref<8x128xf32, #tpu.memory_space<vmem>>, vector<8x128xf32>,
    return
  }
  func.func @transform_0(%arg0: i32) -> (i32, i32) {
    %c0_i32 = arith.constant 0 : i32
    %c0_i32_0 = arith.constant 0 : i32
    return %arg0, %c0_i32 : i32, i32
  }
  func.func @transform_1(%arg0: i32) -> (i32, i32) {
    %c0_i32 = arith.constant 0 : i32
    %c0_i32_0 = arith.constant 0 : i32
    return %arg0, %c0_i32 : i32, i32
  }
  func.func @transform_2(%arg0: i32) -> (i32, i32) {
    %c0_i32 = arith.constant 0 : i32
    %c0_i32_0 = arith.constant 0 : i32
    %c0_i32_1 = arith.constant 0 : i32
    return %c0_i32, %c0_i32_0 : i32, i32
  }
  func.func @transform_3(%arg0: i32) -> (i32, i32) {
    %c0_i32 = arith.constant 0 : i32
    %c0_i32_0 = arith.constant 0 : i32
    %c0_i32_1 = arith.constant 0 : i32
    return %c0_i32, %c0_i32_0 : i32, i32
  }
  func.func @transform_4(%arg0: i32) -> (i32, i32) {
    %c0_i32 = arith.constant 0 : i32
    %c0_i32_0 = arith.constant 0 : i32
    %c0_i32_1 = arith.constant 0 : i32
    return %c0_i32, %c0_i32_0 : i32, i32
  }
  func.func @transform_5(%arg0: i32) -> (i32, i32) {
    %c0_i32 = arith.constant 0 : i32
    %c0_i32_0 = arith.constant 0 : i32
    %c0_i32_1 = arith.constant 0 : i32
    return %c0_i32, %c0_i32_0 : i32, i32
  }
  func.func @transform_6(%arg0: i32) -> (i32, i32) {
    %c0_i32 = arith.constant 0 : i32
    %c0_i32_0 = arith.constant 0 : i32
    return %arg0, %c0_i32 : i32, i32
  }
  func.func @transform_7(%arg0: i32) -> (i32, i32) {
    %c0_i32 = arith.constant 0 : i32
    %c0_i32_0 = arith.constant 0 : i32
    return %arg0, %c0_i32 : i32, i32
  }
}

</mosaic_0001>

<llo_original>
// kernel: tpu_custom_call.1
$region0: #{tpu_custom_call.1}
  #allocation0 [shape = 'u32[]', space=smem, size = 0x4, offset = 0x4, fixed_abs, tag = 'smem constant byte address 0x4 - core index']
  #allocation1 [shape = 'u32[144,128]{1,0:T(1,128)}', space=vmem, size = 0x12000, scoped, tag = 'internal scratch']
  %s0 = inlined_call_operand.hbm [shape: bf16[8,128], index: 0, kind: input, shape index: {}]
  %s1 = inlined_call_operand.hbm [shape: bf16[8,256], index: 1, kind: input, shape index: {}]
  %s2 = inlined_call_operand.hbm [shape: bf16[128,128], index: 2, kind: input, shape index: {}]
  %s3 = inlined_call_operand.vmem [shape: f32[1,128], index: 3, kind: input, shape index: {}]
  %s4 = inlined_call_operand.hbm [shape: bf16[256,128], index: 4, kind: input, shape index: {}]
  %s5 = inlined_call_operand.vmem [shape: f32[1,128], index: 5, kind: input, shape index: {}]
  %s6 = inlined_call_operand.hbm [shape: f32[8,128], index: 6, kind: output, shape index: {0}]
  %s7 = inlined_call_operand.hbm [shape: f32[8,128], index: 7, kind: output, shape index: {1}]
  %8 = xla_tuple %s6, %s7
  %s9 = sld [smem:[#allocation0]]
  $region58: #{tpu_custom_call.1} parent=0
    _
  %s11 = ssub.s32 1, %s9
  %s12 = scalar_select 0, %s11, %s9
  $region1: #{tpu_custom_call.1} parent=0
    #allocation2 [shape = 'u8[2048]{0}', space=vmem, size = 0x800, scoped, tag = 'input window, operand 0, single buffered']
    #allocation3 [shape = 's32[1]{0}', space=sflag, size = 0x4, scoped, tag = 'scoped memory for tpu_custom_call.1']
    #allocation4 [shape = 's32[1]{0}', space=sflag, size = 0x4, scoped, tag = 'scoped memory for tpu_custom_call.1']
    #allocation5 [shape = 'u8[4096]{0}', space=vmem, size = 0x1000, scoped, tag = 'input window, operand 1, single buffered']
    #allocation6 [shape = 's32[1]{0}', space=sflag, size = 0x4, scoped, tag = 'scoped memory for tpu_custom_call.1']
    #allocation7 [shape = 'u8[32768]{0}', space=vmem, size = 0x8000, scoped, tag = 'input window, operand 2, single buffered']
    #allocation8 [shape = 'u8[65536]{0}', space=vmem, size = 0x10000, scoped, tag = 'input window, operand 4, single buffered']
    #allocation9 [shape = 's32[1]{0}', space=sflag, size = 0x4, scoped, tag = 'scoped memory for tpu_custom_call.1']
    #allocation10 [shape = 'u8[4096]{0}', space=vmem, size = 0x1000, scoped, tag = 'output window, operand 0, single buffered']
    #allocation11 [shape = 'u8[4096]{0}', space=vmem, size = 0x1000, scoped, tag = 'output window, operand 1, single buffered']
    #allocation12 [shape = 's32[1]{0}', space=sflag, size = 0x4, scoped, tag = 'scoped memory for tpu_custom_call.1']
    %13 = vsyncpa [#allocation3], 0
    %14 = vsyncpa [#allocation6], 0
    %15 = vsyncpa [#allocation9], 0
    %16 = vsyncpa [#allocation4], 0
    %17 = vsyncpa [#allocation12], 0
    // Predicated region
    $region2: #{tpu_custom_call.1} parent=1 // pred_check
      _
    $region3: #{tpu_custom_call.1} parent=1 // pred_check_branch
      %19 = sbr.rel (0) target = $region5
    $region4: #{tpu_custom_call.1} parent=1 // pred_region
      %s21 = ssub.s32 64, 64
      %22 = vsyncadd [#allocation3], %s21
      %s24 = sshll.u32 [#allocation2], 4
      %s25 = int_to_ptr.vmem [resolvable:$true] %s24
      %27 = dma.hbm_to_vmem [thread:$0]  %s0, 64, %s25, [#allocation3]
    $region5: #{tpu_custom_call.1} parent=1 // pred_fallthru
      _
    // Predicated region
    $region6: #{tpu_custom_call.1} parent=1 // pred_check
      _
    $region7: #{tpu_custom_call.1} parent=1 // pred_check_branch
      %29 = sbr.rel (0) target = $region9
    $region8: #{tpu_custom_call.1} parent=1 // pred_region
      %s31 = ssub.s32 128, 128
      %32 = vsyncadd [#allocation6], %s31
      %s34 = sshll.u32 [#allocation5], 4
      %s35 = int_to_ptr.vmem [resolvable:$true] %s34
      %37 = dma.hbm_to_vmem [thread:$0]  %s1, 128, %s35, [#allocation6]
    $region9: #{tpu_custom_call.1} parent=1 // pred_fallthru
      _
    // Predicated region
    $region10: #{tpu_custom_call.1} parent=1 // pred_check
      _
    $region11: #{tpu_custom_call.1} parent=1 // pred_check_branch
      %39 = sbr.rel (0) target = $region13
    $region12: #{tpu_custom_call.1} parent=1 // pred_region
      %s41 = ssub.s32 1024, 1024
      %42 = vsyncadd [#allocation6], %s41
      %s43 = sshll.u32 [#allocation7], 4
      %s44 = int_to_ptr.vmem [resolvable:$true] %s43
      %49 = dma.hbm_to_vmem [thread:$0]  %s2, 1024, %s44, [#allocation6], 64, 64, 4
    $region13: #{tpu_custom_call.1} parent=1 // pred_fallthru
      _
    // Predicated region
    $region14: #{tpu_custom_call.1} parent=1 // pred_check
      _
    $region15: #{tpu_custom_call.1} parent=1 // pred_check_branch
      %51 = sbr.rel (0) target = $region17
    $region16: #{tpu_custom_call.1} parent=1 // pred_region
      _
    $region17: #{tpu_custom_call.1} parent=1 // pred_fallthru
      _
    // Predicated region
    $region18: #{tpu_custom_call.1} parent=1 // pred_check
      _
    $region19: #{tpu_custom_call.1} parent=1 // pred_check_branch
      %53 = sbr.rel (0) target = $region21
    $region20: #{tpu_custom_call.1} parent=1 // pred_region
      %s55 = ssub.s32 2048, 2048
      %56 = vsyncadd [#allocation9], %s55
      %s57 = sshll.u32 [#allocation8], 4
      %s58 = int_to_ptr.vmem [resolvable:$true] %s57
      %63 = dma.hbm_to_vmem [thread:$0]  %s4, 2048, %s58, [#allocation9], 64, 64, 4
    $region21: #{tpu_custom_call.1} parent=1 // pred_fallthru
      _
    // Predicated region
    $region22: #{tpu_custom_call.1} parent=1 // pred_check
      _
    $region23: #{tpu_custom_call.1} parent=1 // pred_check_branch
      %65 = sbr.rel (0) target = $region25
    $region24: #{tpu_custom_call.1} parent=1 // pred_region
      _
    $region25: #{tpu_custom_call.1} parent=1 // pred_fallthru
      _
    // Predicated region
    $region26: #{tpu_custom_call.1} parent=1 // pred_check
      _
    $region27: #{tpu_custom_call.1} parent=1 // pred_check_branch
      %67 = sbr.rel (0) target = $region29
    $region28: #{tpu_custom_call.1} parent=1 // pred_region
      %68 = dma.done [#allocation3], 64
    $region29: #{tpu_custom_call.1} parent=1 // pred_fallthru
      _
    // Predicated region
    $region30: #{tpu_custom_call.1} parent=1 // pred_check
      _
    $region31: #{tpu_custom_call.1} parent=1 // pred_check_branch
      %70 = sbr.rel (0) target = $region33
    $region32: #{tpu_custom_call.1} parent=1 // pred_region
      %71 = dma.done [#allocation6], 128
    $region33: #{tpu_custom_call.1} parent=1 // pred_fallthru
      _
    // Predicated region
    $region34: #{tpu_custom_call.1} parent=1 // pred_check
      _
    $region35: #{tpu_custom_call.1} parent=1 // pred_check_branch
      %73 = sbr.rel (0) target = $region37
    $region36: #{tpu_custom_call.1} parent=1 // pred_region
      %74 = dma.done [#allocation6], 1024
    $region37: #{tpu_custom_call.1} parent=1 // pred_fallthru
      _
    // Predicated region
    $region38: #{tpu_custom_call.1} parent=1 // pred_check
      _
    $region39: #{tpu_custom_call.1} parent=1 // pred_check_branch
      %76 = sbr.rel (0) target = $region41
    $region40: #{tpu_custom_call.1} parent=1 // pred_region
      %77 = dma.done [#allocation9], 2048
    $region41: #{tpu_custom_call.1} parent=1 // pred_fallthru
      _
    %v79 = vld [vmem:[#allocation2] sm:$0xf]
    %v80 = vld [vmem:[#allocation7] sm:$0xf]
    %v81 = vld [vmem:[#allocation7 + $0x4] sm:$0xf]
    %v82 = vld [vmem:[#allocation7 + $0x8] sm:$0xf]
    %v83 = vld [vmem:[#allocation7 + $0xc] sm:$0xf]
    %v84 = vld [vmem:[#allocation7 + $0x10] sm:$0xf]
    %v85 = vld [vmem:[#allocation7 + $0x14] sm:$0xf]
    %v86 = vld [vmem:[#allocation7 + $0x18] sm:$0xf]
    %v87 = vld [vmem:[#allocation7 + $0x1c] sm:$0xf]
    %v88 = vld [vmem:[#allocation7 + $0x20] sm:$0xf]
    %v89 = vld [vmem:[#allocation7 + $0x24] sm:$0xf]
    %v90 = vld [vmem:[#allocation7 + $0x28] sm:$0xf]
    %v91 = vld [vmem:[#allocation7 + $0x2c] sm:$0xf]
    %v92 = vld [vmem:[#allocation7 + $0x30] sm:$0xf]
    %v93 = vld [vmem:[#allocation7 + $0x34] sm:$0xf]
    %v94 = vld [vmem:[#allocation7 + $0x38] sm:$0xf]
    %v95 = vld [vmem:[#allocation7 + $0x3c] sm:$0xf]
    %v96 = vld [vmem:[%s3] sm:$0x1]
    %v98 = vlaneseq
    %v99 = vshrl.u32 %v98, 7
    %v100 = vsub.s32 0, %v99
    %v101 = vrot.slane %v96, %v100
    %v119 = vunpack.c.l.b16 %v80
    %v120 = vunpack.c.l.b16 %v81
    %v121 = vunpack.c.l.b16 %v82
    %v122 = vunpack.c.l.b16 %v83
    %v123 = vunpack.c.l.b16 %v84
    %v124 = vunpack.c.l.b16 %v85
    %v125 = vunpack.c.l.b16 %v86
    %v126 = vunpack.c.l.b16 %v87
    %v127 = vunpack.c.l.b16 %v88
    %v128 = vunpack.c.l.b16 %v89
    %v129 = vunpack.c.l.b16 %v90
    %v130 = vunpack.c.l.b16 %v91
    %v131 = vunpack.c.l.b16 %v92
    %v132 = vunpack.c.l.b16 %v93
    %v133 = vunpack.c.l.b16 %v94
    %v134 = vunpack.c.l.b16 %v95
    %v135 = vpack.c.b16 %v120, %v119
    %v136 = vpack.c.b16 %v122, %v121
    %v137 = vpack.c.b16 %v124, %v123
    %v138 = vpack.c.b16 %v126, %v125
    %v139 = vpack.c.b16 %v128, %v127
    %v140 = vpack.c.b16 %v130, %v129
    %v141 = vpack.c.b16 %v132, %v131
    %v142 = vpack.c.b16 %v134, %v133
    %151 = vmatprep.subr.bf16.mxu0 0
    %152 = vmatpush1.bf16.msra.mxu0 %v135
    %153 = vmatprep.subr.bf16.mxu0 0
    %154 = vmatpush1.bf16.msra.mxu0 %v136
    %155 = vmatprep.subr.bf16.mxu0 0
    %156 = vmatpush1.bf16.msra.mxu0 %v137
    %157 = vmatprep.subr.bf16.mxu0 0
    %158 = vmatpush1.bf16.msra.mxu0 %v138
    %159 = vmatprep.subr.bf16.mxu0 0
    %160 = vmatpush1.bf16.msra.mxu0 %v139
    %161 = vmatprep.subr.bf16.mxu0 0
    %162 = vmatpush1.bf16.msra.mxu0 %v140
    %163 = vmatprep.subr.bf16.mxu0 0
    %164 = vmatpush1.bf16.msra.mxu0 %v141
    %165 = vmatprep.subr.bf16.mxu0 0
    %166 = vmatpush1.bf16.msra.mxu0 %v142
    %167 = vmatprep.subr.bf16.mxu0 0
    %168 = vmatpush1.bf16.msra.mxu0 0
    %169 = vmatprep.subr.bf16.mxu0 0
    %170 = vmatpush1.bf16.msra.mxu0 0
    %171 = vmatprep.subr.bf16.mxu0 0
    %172 = vmatpush1.bf16.msra.mxu0 0
    %173 = vmatprep.subr.bf16.mxu0 0
    %174 = vmatpush1.bf16.msra.mxu0 0
    %175 = vmatprep.subr.bf16.mxu0 0
    %176 = vmatpush1.bf16.msra.mxu0 0
    %177 = vmatprep.subr.bf16.mxu0 0
    %178 = vmatpush1.bf16.msra.mxu0 0
    %179 = vmatprep.subr.bf16.mxu0 0
    %180 = vmatpush1.bf16.msra.mxu0 0
    %181 = vmatprep.subr.bf16.mxu0 0
    %182 = vmatpush1.bf16.msra.mxu0 0
    %183 = vmatprep.mubr.bf16.mxu0 0
    %184 = vmatmul.mubr.bf16.gmra.mrb[0].mxu0 %v79
    %v185 = vpop.f32.mrb[0].mxu0
    %v186 = vadd.f32 %v101, %v185
    %v187 = vpop.f32.mrb[0].mxu0
    %v188 = vpop.f32.mrb[0].mxu0
    %v189 = vpop.f32.mrb[0].mxu0
    %190 = vdwg.mxu0
    %v191 = vld [vmem:[#allocation5] sm:$0xff]
    %v192 = vld [vmem:[#allocation8] sm:$0xf]
    %v193 = vld [vmem:[#allocation8 + $0x4] sm:$0xf]
    %v194 = vld [vmem:[#allocation8 + $0x8] sm:$0xf]
    %v195 = vld [vmem:[#allocation8 + $0xc] sm:$0xf]
    %v196 = vld [vmem:[#allocation8 + $0x10] sm:$0xf]
    %v197 = vld [vmem:[#allocation8 + $0x14] sm:$0xf]
    %v198 = vld [vmem:[#allocation8 + $0x18] sm:$0xf]
    %v199 = vld [vmem:[#allocation8 + $0x1c] sm:$0xf]
    %v200 = vld [vmem:[#allocation8 + $0x20] sm:$0xf]
    %v201 = vld [vmem:[#allocation8 + $0x24] sm:$0xf]
    %v202 = vld [vmem:[#allocation8 + $0x28] sm:$0xf]
    %v203 = vld [vmem:[#allocation8 + $0x2c] sm:$0xf]
    %v204 = vld [vmem:[#allocation8 + $0x30] sm:$0xf]
    %v205 = vld [vmem:[#allocation8 + $0x34] sm:$0xf]
    %v206 = vld [vmem:[#allocation8 + $0x38] sm:$0xf]
    %v207 = vld [vmem:[#allocation8 + $0x3c] sm:$0xf]
    %v208 = vld [vmem:[#allocation8 + $0x40] sm:$0xf]
    %v209 = vld [vmem:[#allocation8 + $0x44] sm:$0xf]
    %v210 = vld [vmem:[#allocation8 + $0x48] sm:$0xf]
    %v211 = vld [vmem:[#allocation8 + $0x4c] sm:$0xf]
    %v212 = vld [vmem:[#allocation8 + $0x50] sm:$0xf]
    %v213 = vld [vmem:[#allocation8 + $0x54] sm:$0xf]
    %v214 = vld [vmem:[#allocation8 + $0x58] sm:$0xf]
    %v215 = vld [vmem:[#allocation8 + $0x5c] sm:$0xf]
    %v216 = vld [vmem:[#allocation8 + $0x60] sm:$0xf]
    %v217 = vld [vmem:[#allocation8 + $0x64] sm:$0xf]
    %v218 = vld [vmem:[#allocation8 + $0x68] sm:$0xf]
    %v219 = vld [vmem:[#allocation8 + $0x6c] sm:$0xf]
    %v220 = vld [vmem:[#allocation8 + $0x70] sm:$0xf]
    %v221 = vld [vmem:[#allocation8 + $0x74] sm:$0xf]
    %v222 = vld [vmem:[#allocation8 + $0x78] sm:$0xf]
    %v223 = vld [vmem:[#allocation8 + $0x7c] sm:$0xf]
    %v224 = vld [vmem:[%s5] sm:$0x1]
    %v226 = vlaneseq
    %v227 = vshrl.u32 %v226, 7
    %v228 = vsub.s32 0, %v227
    %v229 = vrot.slane %v224, %v228
    %v232 = vunpack.c.l.b16 %v191
    %v233 = vunpack.c.h.b16 %v191
    %v234 = vpack.c.b16 %v232, %v232
    %v235 = vpack.c.b16 %v233, %v233
    %v270 = vunpack.c.l.b16 %v192
    %v271 = vunpack.c.l.b16 %v193
    %v272 = vunpack.c.l.b16 %v194
    %v273 = vunpack.c.l.b16 %v195
    %v274 = vunpack.c.l.b16 %v196
    %v275 = vunpack.c.l.b16 %v197
    %v276 = vunpack.c.l.b16 %v198
    %v277 = vunpack.c.l.b16 %v199
    %v278 = vunpack.c.l.b16 %v200
    %v279 = vunpack.c.l.b16 %v201
    %v280 = vunpack.c.l.b16 %v202
    %v281 = vunpack.c.l.b16 %v203
    %v282 = vunpack.c.l.b16 %v204
    %v283 = vunpack.c.l.b16 %v205
    %v284 = vunpack.c.l.b16 %v206
    %v285 = vunpack.c.l.b16 %v207
    %v286 = vunpack.c.l.b16 %v208
    %v287 = vunpack.c.l.b16 %v209
    %v288 = vunpack.c.l.b16 %v210
    %v289 = vunpack.c.l.b16 %v211
    %v290 = vunpack.c.l.b16 %v212
    %v291 = vunpack.c.l.b16 %v213
    %v292 = vunpack.c.l.b16 %v214
    %v293 = vunpack.c.l.b16 %v215
    %v294 = vunpack.c.l.b16 %v216
    %v295 = vunpack.c.l.b16 %v217
    %v296 = vunpack.c.l.b16 %v218
    %v297 = vunpack.c.l.b16 %v219
    %v298 = vunpack.c.l.b16 %v220
    %v299 = vunpack.c.l.b16 %v221
    %v300 = vunpack.c.l.b16 %v222
    %v301 = vunpack.c.l.b16 %v223
    %v302 = vpack.c.b16 %v271, %v270
    %v303 = vpack.c.b16 %v273, %v272
    %v304 = vpack.c.b16 %v275, %v274
    %v305 = vpack.c.b16 %v277, %v276
    %v306 = vpack.c.b16 %v279, %v278
    %v307 = vpack.c.b16 %v281, %v280
    %v308 = vpack.c.b16 %v283, %v282
    %v309 = vpack.c.b16 %v285, %v284
    %v310 = vpack.c.b16 %v287, %v286
    %v311 = vpack.c.b16 %v289, %v288
    %v312 = vpack.c.b16 %v291, %v290
    %v313 = vpack.c.b16 %v293, %v292
    %v314 = vpack.c.b16 %v295, %v294
    %v315 = vpack.c.b16 %v297, %v296
    %v316 = vpack.c.b16 %v299, %v298
    %v317 = vpack.c.b16 %v301, %v300
    %334 = vmatprep.subr.bf16.mxu0 0
    %335 = vmatpush1.bf16.msra.mxu0 %v302
    %336 = vmatprep.subr.bf16.mxu0 0
    %337 = vmatpush1.bf16.msra.mxu0 %v303
    %338 = vmatprep.subr.bf16.mxu0 0
    %339 = vmatpush1.bf16.msra.mxu0 %v304
    %340 = vmatprep.subr.bf16.mxu0 0
    %341 = vmatpush1.bf16.msra.mxu0 %v305
    %342 = vmatprep.subr.bf16.mxu0 0
    %343 = vmatpush1.bf16.msra.mxu0 %v306
    %344 = vmatprep.subr.bf16.mxu0 0
    %345 = vmatpush1.bf16.msra.mxu0 %v307
    %346 = vmatprep.subr.bf16.mxu0 0
    %347 = vmatpush1.bf16.msra.mxu0 %v308
    %348 = vmatprep.subr.bf16.mxu0 0
    %349 = vmatpush1.bf16.msra.mxu0 %v309
    %350 = vmatprep.subr.bf16.mxu0 0
    %351 = vmatpush1.bf16.msra.mxu0 %v310
    %352 = vmatprep.subr.bf16.mxu0 0
    %353 = vmatpush1.bf16.msra.mxu0 %v311
    %354 = vmatprep.subr.bf16.mxu0 0
    %355 = vmatpush1.bf16.msra.mxu0 %v312
    %356 = vmatprep.subr.bf16.mxu0 0
    %357 = vmatpush1.bf16.msra.mxu0 %v313
    %358 = vmatprep.subr.bf16.mxu0 0
    %359 = vmatpush1.bf16.msra.mxu0 %v314
    %360 = vmatprep.subr.bf16.mxu0 0
    %361 = vmatpush1.bf16.msra.mxu0 %v315
    %362 = vmatprep.subr.bf16.mxu0 0
    %363 = vmatpush1.bf16.msra.mxu0 %v316
    %364 = vmatprep.subr.bf16.mxu0 0
    %365 = vmatpush1.bf16.msra.mxu0 %v317
    %366 = vmatprep.mubr.bf16.mxu0 %v235
    %367 = vmatmul.mubr.bf16.gmra.mrb[0].mxu0 %v234
    %v368 = vpop.f32.mrb[0].mxu0
    %v369 = vadd.f32 %v229, %v368
    %v370 = vpop.f32.mrb[0].mxu0
    %v371 = vpop.f32.mrb[0].mxu0
    %v372 = vpop.f32.mrb[0].mxu0
    %373 = vdwg.mxu0
    %v374 = vmul.f32 %v186, %v186
    %375 = vadd.xlane.f32.xlu0 %v374
    %v376 = vpop.xlane.xlu0 %375
    %v377 = vmax.f32 %v376, 1e-24
    %v378 = vmul.f32 %v369, %v369
    %379 = vadd.xlane.f32.xlu0 %v378
    %v380 = vpop.xlane.xlu0 %379
    %v381 = vmax.f32 %v380, 1e-24
    %v382 = vrsqrt.pop %v377
    %v383 = vmul.f32 %v186, %v382
    %384 = vst [vmem:[#allocation10] sm:$0xff] %v383
    %v385 = vrsqrt.pop %v381
    %v386 = vmul.f32 %v369, %v385
    %387 = vst [vmem:[#allocation11] sm:$0xff] %v386
    // Predicated region
    $region42: #{tpu_custom_call.1} parent=1 // pred_check
      _
    $region43: #{tpu_custom_call.1} parent=1 // pred_check_branch
      %389 = sbr.rel (0) target = $region45
    $region44: #{tpu_custom_call.1} parent=1 // pred_region
      %s391 = ssub.s32 128, 128
      %392 = vsyncadd [#allocation4], %s391
      %s394 = sshll.u32 [#allocation10], 4
      %s395 = int_to_ptr.vmem [resolvable:$true] %s394
      %397 = dma.vmem_to_hbm [thread:$0]  %s395, 128, %s6, [#allocation4]
    $region45: #{tpu_custom_call.1} parent=1 // pred_fallthru
      _
    // Predicated region
    $region46: #{tpu_custom_call.1} parent=1 // pred_check
      _
    $region47: #{tpu_custom_call.1} parent=1 // pred_check_branch
      %399 = sbr.rel (0) target = $region49
    $region48: #{tpu_custom_call.1} parent=1 // pred_region
      %s401 = ssub.s32 128, 128
      %402 = vsyncadd [#allocation12], %s401
      %s404 = sshll.u32 [#allocation11], 4
      %s405 = int_to_ptr.vmem [resolvable:$true] %s404
      %407 = dma.vmem_to_hbm [thread:$0]  %s405, 128, %s7, [#allocation12]
    $region49: #{tpu_custom_call.1} parent=1 // pred_fallthru
      _
    // Predicated region
    $region50: #{tpu_custom_call.1} parent=1 // pred_check
      _
    $region51: #{tpu_custom_call.1} parent=1 // pred_check_branch
      %409 = sbr.rel (0) target = $region53
    $region52: #{tpu_custom_call.1} parent=1 // pred_region
      %410 = dma.done [#allocation4], 128
    $region53: #{tpu_custom_call.1} parent=1 // pred_fallthru
      _
    // Predicated region
    $region54: #{tpu_custom_call.1} parent=1 // pred_check
      _
    $region55: #{tpu_custom_call.1} parent=1 // pred_check_branch
      %412 = sbr.rel (0) target = $region57
    $region56: #{tpu_custom_call.1} parent=1 // pred_region
      %413 = dma.done [#allocation12], 128
    $region57: #{tpu_custom_call.1} parent=1 // pred_fallthru
      _
    %414 = vsyncpa [#allocation3], 1
    %415 = vsyncpa [#allocation6], 1
    %416 = vsyncpa [#allocation9], 1
    %417 = vsyncpa [#allocation4], 1
    %418 = vsyncpa [#allocation12], 1

</llo_original>
